<compile_context>
chip_gen: v5e
topology: v5e:2x2
jax: 0.10.0
libtpu: 0.0.40
codegen_flags: <defaults>
</compile_context>

<pallas_src>
import jax
import jax.numpy as jnp
from jax.experimental import pallas as pl
from jax.experimental.pallas import tpu as pltpu

_LANES = 128
_PALLAS_MIN_BATCH = 1 << 16  # below this, fused XLA (x@W.T+b, relu) wins end-to-end


def _round_up(a: int, m: int) -> int:
    return (a + m - 1) // m * m


def _linear_relu_kernel(w_ref, b_ref, x_ref, o_ref):
    # w_ref: (6,) f32 in SMEM = [w00, w01, w02, w10, w11, w12] (torch (out,in) row-major)
    # b_ref: (2,) f32 in SMEM
    # x_ref: (3, rows, 128) in VMEM   (feature, sublane-row, lane)
    # o_ref: (2, rows, 128) in VMEM
    x0 = x_ref[0].astype(jnp.float32)          # (rows, 128) — full sublane/lane dense
    x1 = x_ref[1].astype(jnp.float32)
    x2 = x_ref[2].astype(jnp.float32)
    # y_j = sum_k w[j,k] * x_k + b_j  — pure VPU broadcast FMA from SMEM scalars.
    y0 = w_ref[0] * x0 + w_ref[1] * x1 + w_ref[2] * x2 + b_ref[0]
    y1 = w_ref[3] * x0 + w_ref[4] * x1 + w_ref[5] * x2 + b_ref[1]
    # Write the two output feature rows directly (no concat / sublane shuffle).
    o_ref[0] = jnp.maximum(y0, 0.0).astype(o_ref.dtype)
    o_ref[1] = jnp.maximum(y1, 0.0).astype(o_ref.dtype)


def deep_network_forward(x, weight, bias, *, rows_per_tile=2048, use_pallas=None):
    """Mirrors DeepNetwork.forward: unsqueeze 1-D input, then relu(linear(x)).

    x: (B, 3) or (3,);  weight: (2, 3) (torch nn.Linear layout);  bias: (2,).
    Returns (B, 2) (or (1, 2) for a 1-D input).

    rows_per_tile: sublane rows (of 128 samples each) per grid step; default
    2048 rows = 262,144 samples/step (~10 MiB double-buffered VMEM — safe on
    v5e/v6e/v7x).  On v5e/v6e (128 MiB VMEM) this can be raised to 4096-8192.
    """
    if x.ndim == 1:
        x = x[None, :]
    B, F_in = x.shape
    F_out = weight.shape[0]

    if use_pallas is None:
        use_pallas = B >= _PALLAS_MIN_BATCH
    if not use_pallas:
        # Small / row-major batches: fused XLA pass beats Pallas + layout plumbing.
        return jnp.maximum(x @ weight.T + bias[None, :], 0.0).astype(x.dtype)

    # --- layout plumbing: feature-major, sublane+lane dense -----------------
    Bp = _round_up(B, _LANES)                    # pad only to 128, never to tile
    R = Bp // _LANES
    xt = jnp.transpose(x)                        # (3, B)
    if Bp != B:
        xt = jnp.pad(xt, ((0, 0), (0, Bp - B)))  # <=127 extra columns
    xr = xt.reshape(F_in, R, _LANES)             # free row-major reshape

    # Rows per grid step: full R if it fits, else a multiple of 8 (block-shape
    # (8,128) constraint); Pallas masks the partial boundary block.
    rows_tile = min(rows_per_tile, R)
    if rows_tile < R:
        rows_tile = _round_up(rows_tile, 8)
    grid = (pl.cdiv(R, rows_tile),)

    cost = pl.CostEstimate(
        flops=12 * Bp,                            # 6 mul + 4 add + 2 max / sample
        transcendentals=0,
        bytes_accessed=(F_in + F_out) * 4 * Bp,
    )

    out_r = pl.pallas_call(
        _linear_relu_kernel,
        out_shape=jax.ShapeDtypeStruct((F_out, R, _LANES), x.dtype),
        grid=grid,
        in_specs=[
            pl.BlockSpec(memory_space=pltpu.MemorySpace.SMEM),          # weight (6,)
            pl.BlockSpec(memory_space=pltpu.MemorySpace.SMEM),          # bias   (2,)
            pl.BlockSpec((F_in, rows_tile, _LANES), lambda i: (0, i, 0)),
        ],
        out_specs=pl.BlockSpec((F_out, rows_tile, _LANES), lambda i: (0, i, 0)),
        compiler_params=pltpu.CompilerParams(
            # "parallel" lets the batch axis shard across TensorCores on
            # multi-core chips (v7x); no effect on single-TC v5e/v6e.
            dimension_semantics=("parallel",),
        ),
        cost_estimate=cost,
    )(
        weight.reshape(-1).astype(jnp.float32),
        bias.reshape(-1).astype(jnp.float32),
        xr,
    )

    out = out_r.reshape(F_out, Bp)[:, :B]        # (2, B)
    return jnp.transpose(out)                    # (B, 2)


if __name__ == "__main__":
    key = jax.random.PRNGKey(0)
    k_x, k_w, k_b, k_big = jax.random.split(key, 4)

    # nn.Linear(3, 2): weight (2,3), bias (2,) — Kaiming-uniform-ish scale.
    bound = 1.0 / jnp.sqrt(3.0)
    weight = jax.random.uniform(k_w, (2, 3), jnp.float32, -bound, bound)
    bias = jax.random.uniform(k_b, (2,), jnp.float32, -bound, bound)

    # 2-D small-batch case: (batch=2, features=3).
    x = jax.random.normal(k_x, (2, 3), jnp.float32)
    out = deep_network_forward(x, weight, bias, use_pallas=True)
    jax.block_until_ready(out)

    # 1-D input case: (3,) -> unsqueezed to (1, 3).
    x1d = jax.random.normal(k_x, (3,), jnp.float32)
    out1d = deep_network_forward(x1d, weight, bias, use_pallas=True)
    jax.block_until_ready(out1d)

    # Larger batch: exercises the multi-step grid and the masked partial
    # boundary block (B=3000 -> Bp=3072, R=24, rows_tile=16 -> grid=2).
    x_big = jax.random.normal(k_big, (3000, 3), jnp.float32)
    out_big = deep_network_forward(x_big, weight, bias,
                                   rows_per_tile=16, use_pallas=True)
    jax.block_until_ready(out_big)

    # Plain-JAX references.
    ref = jnp.maximum(x @ weight.T + bias, 0.0)
    ref1d = jnp.maximum(x1d[None, :] @ weight.T + bias, 0.0)
    ref_big = jnp.maximum(x_big @ weight.T + bias, 0.0)

    assert out.shape == (2, 2) and out1d.shape == (1, 2) and out_big.shape == (3000, 2)
    assert jnp.allclose(out, ref, atol=1e-5)
    assert jnp.allclose(out1d, ref1d, atol=1e-5)
    assert jnp.allclose(out_big, ref_big, atol=1e-5)

    print("KERNEL_OK")
</pallas_src>

<mosaic_0001>
module attributes {stable_mosaic.version = 11 : i64} {
  func.func @_linear_relu_kernel(%arg0: i32, %arg1: memref<6xf32, #tpu.memory_space<smem>>, %arg2: memref<2xf32, #tpu.memory_space<smem>>, %arg3: memref<3x1x128xf32, #tpu.memory_space<vmem>>, %arg4: memref<2x1x128xf32, #tpu.memory_space<vmem>>) attributes {dimension_semantics = [#tpu.dimension_semantics<parallel>], iteration_bounds = array<i64: 1>, scalar_prefetch = 0 : i64, scratch_operands = 0 : i64, tpu.core_type = #tpu.core_type<tc>, window_params = [{transform_indices = @transform_0, window_bounds = array<i64: 6>}, {transform_indices = @transform_1, window_bounds = array<i64: 2>}, {transform_indices = @transform_2, window_bounds = array<i64: 3, 1, 128>}, {transform_indices = @transform_3, window_bounds = array<i64: 2, 1, 128>}]} {
    %c0 = arith.constant 0 : index
    %c0_0 = arith.constant 0 : index
    %c0_1 = arith.constant 0 : index
    %0 = vector.load %arg3[%c0, %c0_0, %c0_1] : memref<3x1x128xf32, #tpu.memory_space<vmem>>, vector<1x1x128xf32>
    %1 = vector.shape_cast %0 : vector<1x1x128xf32> to vector<1x128xf32>
    %c1 = arith.constant 1 : index
    %c0_2 = arith.constant 0 : index
    %c0_3 = arith.constant 0 : index
    %2 = vector.load %arg3[%c1, %c0_2, %c0_3] : memref<3x1x128xf32, #tpu.memory_space<vmem>>, vector<1x1x128xf32>
    %3 = vector.shape_cast %2 : vector<1x1x128xf32> to vector<1x128xf32>
    %c2 = arith.constant 2 : index
    %c0_4 = arith.constant 0 : index
    %c0_5 = arith.constant 0 : index
    %4 = vector.load %arg3[%c2, %c0_4, %c0_5] : memref<3x1x128xf32, #tpu.memory_space<vmem>>, vector<1x1x128xf32>
    %5 = vector.shape_cast %4 : vector<1x1x128xf32> to vector<1x128xf32>
    %c0_6 = arith.constant 0 : index
    %6 = memref.load %arg1[%c0_6] : memref<6xf32, #tpu.memory_space<smem>>
    %7 = vector.broadcast %6 : f32 to vector<1x128xf32>
    %8 = arith.mulf %7, %1 : vector<1x128xf32>
    %c1_7 = arith.constant 1 : index
    %9 = memref.load %arg1[%c1_7] : memref<6xf32, #tpu.memory_space<smem>>
    %10 = vector.broadcast %9 : f32 to vector<1x128xf32>
    %11 = arith.mulf %10, %3 : vector<1x128xf32>
    %12 = arith.addf %8, %11 : vector<1x128xf32>
    %c2_8 = arith.constant 2 : index
    %13 = memref.load %arg1[%c2_8] : memref<6xf32, #tpu.memory_space<smem>>
    %14 = vector.broadcast %13 : f32 to vector<1x128xf32>
    %15 = arith.mulf %14, %5 : vector<1x128xf32>
    %16 = arith.addf %12, %15 : vector<1x128xf32>
    %c0_9 = arith.constant 0 : index
    %17 = memref.load %arg2[%c0_9] : memref<2xf32, #tpu.memory_space<smem>>
    %18 = vector.broadcast %17 : f32 to vector<1x128xf32>
    %19 = arith.addf %16, %18 : vector<1x128xf32>
    %c3 = arith.constant 3 : index
    %20 = memref.load %arg1[%c3] : memref<6xf32, #tpu.memory_space<smem>>
    %21 = vector.broadcast %20 : f32 to vector<1x128xf32>
    %22 = arith.mulf %21, %1 : vector<1x128xf32>
    %c4 = arith.constant 4 : index
    %23 = memref.load %arg1[%c4] : memref<6xf32, #tpu.memory_space<smem>>
    %24 = vector.broadcast %23 : f32 to vector<1x128xf32>
    %25 = arith.mulf %24, %3 : vector<1x128xf32>
    %26 = arith.addf %22, %25 : vector<1x128xf32>
    %c5 = arith.constant 5 : index
    %27 = memref.load %arg1[%c5] : memref<6xf32, #tpu.memory_space<smem>>
    %28 = vector.broadcast %27 : f32 to vector<1x128xf32>
    %29 = arith.mulf %28, %5 : vector<1x128xf32>
    %30 = arith.addf %26, %29 : vector<1x128xf32>
    %c1_10 = arith.constant 1 : index
    %31 = memref.load %arg2[%c1_10] : memref<2xf32, #tpu.memory_space<smem>>
    %32 = vector.broadcast %31 : f32 to vector<1x128xf32>
    %33 = arith.addf %30, %32 : vector<1x128xf32>
    %cst = arith.constant 0.000000e+00 : f32
    %34 = vector.broadcast %cst : f32 to vector<1x128xf32>
    %35 = arith.maximumf %19, %34 : vector<1x128xf32>
    %c0_11 = arith.constant 0 : index
    %c0_12 = arith.constant 0 : index
    %c0_13 = arith.constant 0 : index
    %36 = vector.load %arg4[%c0_11, %c0_12, %c0_13] : memref<2x1x128xf32, #tpu.memory_space<vmem>>, vector<1x1x128xf32>
    %37 = vector.shape_cast %36 : vector<1x1x128xf32> to vector<1x128xf32>
    %38 = vector.shape_cast %35 : vector<1x128xf32> to vector<1x1x128xf32>
    tpu.vector_store %arg4[%c0_11, %c0_12, %c0_13], %38 {strides = array<i32>} : memref<2x1x128xf32, #tpu.memory_space<vmem>>, vector<1x1x128xf32>,
    %cst_14 = arith.constant 0.000000e+00 : f32
    %39 = vector.broadcast %cst_14 : f32 to vector<1x128xf32>
    %40 = arith.maximumf %33, %39 : vector<1x128xf32>
    %c1_15 = arith.constant 1 : index
    %c0_16 = arith.constant 0 : index
    %c0_17 = arith.constant 0 : index
    %41 = vector.load %arg4[%c1_15, %c0_16, %c0_17] : memref<2x1x128xf32, #tpu.memory_space<vmem>>, vector<1x1x128xf32>
    %42 = vector.shape_cast %41 : vector<1x1x128xf32> to vector<1x128xf32>
    %43 = vector.shape_cast %40 : vector<1x128xf32> to vector<1x1x128xf32>
    tpu.vector_store %arg4[%c1_15, %c0_16, %c0_17], %43 {strides = array<i32>} : memref<2x1x128xf32, #tpu.memory_space<vmem>>, vector<1x1x128xf32>,
    return
  }
  func.func @transform_0(%arg0: i32) -> i32 {
    %c0_i32 = arith.constant 0 : i32
    %c0_i32_0 = arith.constant 0 : i32
    return %c0_i32 : i32
  }
  func.func @transform_1(%arg0: i32) -> i32 {
    %c0_i32 = arith.constant 0 : i32
    %c0_i32_0 = arith.constant 0 : i32
    return %c0_i32 : i32
  }
  func.func @transform_2(%arg0: i32) -> (i32, i32, i32) {
    %c0_i32 = arith.constant 0 : i32
    %c0_i32_0 = arith.constant 0 : i32
    %c0_i32_1 = arith.constant 0 : i32
    return %c0_i32, %arg0, %c0_i32_0 : i32, i32, i32
  }
  func.func @transform_3(%arg0: i32) -> (i32, i32, i32) {
    %c0_i32 = arith.constant 0 : i32
    %c0_i32_0 = arith.constant 0 : i32
    %c0_i32_1 = arith.constant 0 : i32
    return %c0_i32, %arg0, %c0_i32_0 : i32, i32, i32
  }
}

</mosaic_0001>

<llo_original>
// kernel: tpu_custom_call.1
$region0: #{tpu_custom_call.1}
  #allocation0 [shape = 'u32[]', space=smem, size = 0x4, offset = 0x4, fixed_abs, tag = 'smem constant byte address 0x4 - core index']
  #allocation1 [shape = 'u32[72,128]{1,0:T(1,128)}', space=vmem, size = 0x9000, scoped, tag = 'internal scratch']
  %s0 = inlined_call_operand.hbm [shape: f32[6], index: 0, kind: input, shape index: {}]
  %s1 = inlined_call_operand.hbm [shape: f32[2], index: 1, kind: input, shape index: {}]
  %s2 = inlined_call_operand.hbm [shape: f32[3,1,128], index: 2, kind: input, shape index: {}]
  %s3 = inlined_call_operand.hbm [shape: f32[2,1,128], index: 3, kind: output, shape index: {}]
  %s4 = sld [smem:[#allocation0]]
  $region34: #{tpu_custom_call.1} parent=0
    _
  %s6 = ssub.s32 1, %s4
  %s7 = scalar_select 0, %s6, %s4
  $region1: #{tpu_custom_call.1} parent=0
    #allocation2 [shape = 'u8[512]{0}', space=smem, size = 0x200, scoped, tag = 'input window, operand 0, single buffered']
    #allocation3 [shape = 's32[1]{0}', space=sflag, size = 0x4, scoped, tag = 'scoped memory for tpu_custom_call.1']
    #allocation4 [shape = 's32[1]{0}', space=sflag, size = 0x4, scoped, tag = 'scoped memory for tpu_custom_call.1']
    #allocation5 [shape = 's32[1]{0}', space=sflag, size = 0x4, scoped, tag = 'scoped memory for tpu_custom_call.1']
    #allocation6 [shape = 'u8[512]{0}', space=smem, size = 0x200, scoped, tag = 'input window, operand 1, single buffered']
    #allocation7 [shape = 's32[1]{0}', space=sflag, size = 0x4, scoped, tag = 'scoped memory for tpu_custom_call.1']
    #allocation8 [shape = 'u8[1536]{0}', space=vmem, size = 0x800, scoped, tag = 'input window, operand 2, single buffered']
    #allocation9 [shape = 'u8[1024]{0}', space=vmem, size = 0x400, scoped, tag = 'output window, operand 0, single buffered']
    %8 = vsyncpa [#allocation5], 0
    %9 = vsyncpa [#allocation7], 0
    %10 = vsyncpa [#allocation3], 0
    %11 = vsyncpa [#allocation4], 0
    // Predicated region
    $region2: #{tpu_custom_call.1} parent=1 // pred_check
      _
    $region3: #{tpu_custom_call.1} parent=1 // pred_check_branch
      %13 = sbr.rel (0) target = $region5
    $region4: #{tpu_custom_call.1} parent=1 // pred_region
      %15 = vsyncadd [#allocation5], 0
      %s17 = sshll.u32 %s0, 4
      %s18 = int_to_ptr.hbm [resolvable:$true] %s17
      %20 = dma.hbm_to_smem %s18, 16, [#allocation2], [#allocation5]
    $region5: #{tpu_custom_call.1} parent=1 // pred_fallthru
      _
    // Predicated region
    $region6: #{tpu_custom_call.1} parent=1 // pred_check
      _
    $region7: #{tpu_custom_call.1} parent=1 // pred_check_branch
      %22 = sbr.rel (0) target = $region9
    $region8: #{tpu_custom_call.1} parent=1 // pred_region
      %24 = vsyncadd [#allocation7], 0
      %s26 = sshll.u32 %s1, 4
      %s27 = int_to_ptr.hbm [resolvable:$true] %s26
      %29 = dma.hbm_to_smem %s27, 16, [#allocation6], [#allocation7]
    $region9: #{tpu_custom_call.1} parent=1 // pred_fallthru
      _
    // Predicated region
    $region10: #{tpu_custom_call.1} parent=1 // pred_check
      _
    $region11: #{tpu_custom_call.1} parent=1 // pred_check_branch
      %31 = sbr.rel (0) target = $region13
    $region12: #{tpu_custom_call.1} parent=1 // pred_region
      %33 = vsyncadd [#allocation3], 0
      %s34 = sshll.u32 %s2, 4
      %s35 = int_to_ptr.hbm [resolvable:$true] %s34
      %s36 = sshll.u32 [#allocation8], 4
      %s37 = int_to_ptr.vmem [resolvable:$true] %s36
      %42 = dma.hbm_to_vmem [thread:$0]  %s35, 48, %s37, [#allocation3], 16, 16, 1
    $region13: #{tpu_custom_call.1} parent=1 // pred_fallthru
      _
    // Predicated region
    $region14: #{tpu_custom_call.1} parent=1 // pred_check
      _
    $region15: #{tpu_custom_call.1} parent=1 // pred_check_branch
      %44 = sbr.rel (0) target = $region17
    $region16: #{tpu_custom_call.1} parent=1 // pred_region
      %46 = dma.done [#allocation5], 16
    $region17: #{tpu_custom_call.1} parent=1 // pred_fallthru
      _
    // Predicated region
    $region18: #{tpu_custom_call.1} parent=1 // pred_check
      _
    $region19: #{tpu_custom_call.1} parent=1 // pred_check_branch
      %48 = sbr.rel (0) target = $region21
    $region20: #{tpu_custom_call.1} parent=1 // pred_region
      %50 = dma.done [#allocation7], 16
    $region21: #{tpu_custom_call.1} parent=1 // pred_fallthru
      _
    // Predicated region
    $region22: #{tpu_custom_call.1} parent=1 // pred_check
      _
    $region23: #{tpu_custom_call.1} parent=1 // pred_check_branch
      %52 = sbr.rel (0) target = $region25
    $region24: #{tpu_custom_call.1} parent=1 // pred_region
      %54 = dma.done [#allocation3], 48
    $region25: #{tpu_custom_call.1} parent=1 // pred_fallthru
      _
    %55 = sfence
    %v56 = vld [vmem:[#allocation8] sm:$0x1]
    %s57 = scalar_lea.vmem [#allocation8], 1
    %v58 = vld [vmem:[%s57] sm:$0x1]
    %s59 = scalar_lea.vmem [#allocation8], 2
    %v60 = vld [vmem:[%s59] sm:$0x1]
    %s61 = sld [smem:[#allocation2]]
    %v62 = vstv %s61
    %v63 = vmul.f32 %v62, %v56
    %s64 = sld [smem:[#allocation2 + $0x1]]
    %v65 = vstv %s64
    %v66 = vmul.f32 %v65, %v58
    %v67 = vadd.f32 %v63, %v66
    %s68 = sld [smem:[#allocation2 + $0x2]]
    %v69 = vstv %s68
    %v70 = vmul.f32 %v69, %v60
    %v71 = vadd.f32 %v67, %v70
    %s72 = sld [smem:[#allocation6]]
    %v73 = vstv %s72
    %v74 = vadd.f32 %v71, %v73
    %s75 = sld [smem:[#allocation2 + $0x3]]
    %v76 = vstv %s75
    %v77 = vmul.f32 %v76, %v56
    %s78 = sld [smem:[#allocation2 + $0x4]]
    %v79 = vstv %s78
    %v80 = vmul.f32 %v79, %v58
    %v81 = vadd.f32 %v77, %v80
    %s82 = sld [smem:[#allocation2 + $0x5]]
    %v83 = vstv %s82
    %v84 = vmul.f32 %v83, %v60
    %v85 = vadd.f32 %v81, %v84
    %s86 = sld [smem:[#allocation6 + $0x1]]
    %v87 = vstv %s86
    %v88 = vadd.f32 %v85, %v87
    %v89 = vmax.f32 %v74, 0.0
    %90 = vst [vmem:[#allocation9] sm:$0x1] %v89
    %v91 = vmax.f32 %v88, 0.0
    %s92 = scalar_lea.vmem [#allocation9], 1
    %93 = vst [vmem:[%s92] sm:$0x1] %v91
    // Predicated region
    $region26: #{tpu_custom_call.1} parent=1 // pred_check
      _
    $region27: #{tpu_custom_call.1} parent=1 // pred_check_branch
      %95 = sbr.rel (0) target = $region29
    $region28: #{tpu_custom_call.1} parent=1 // pred_region
      %97 = vsyncadd [#allocation4], 0
      %s98 = sshll.u32 [#allocation9], 4
      %s99 = int_to_ptr.vmem [resolvable:$true] %s98
      %s100 = sshll.u32 %s3, 4
      %s101 = int_to_ptr.hbm [resolvable:$true] %s100
      %106 = dma.vmem_to_hbm [thread:$0]  %s99, 32, %s101, [#allocation4], 16, 16, 1
    $region29: #{tpu_custom_call.1} parent=1 // pred_fallthru
      _
    // Predicated region
    $region30: #{tpu_custom_call.1} parent=1 // pred_check
      _
    $region31: #{tpu_custom_call.1} parent=1 // pred_check_branch
      %108 = sbr.rel (0) target = $region33
    $region32: #{tpu_custom_call.1} parent=1 // pred_region
      %110 = dma.done [#allocation4], 32
    $region33: #{tpu_custom_call.1} parent=1 // pred_fallthru
      _
    %111 = vsyncpa [#allocation3], 1
    %112 = vsyncpa [#allocation4], 1
    %113 = vsyncpa [#allocation5], 1
    %114 = vsyncpa [#allocation7], 1

</llo_original>
